<compile_context>
chip_gen: v7x
topology: tpu7x:2x2x1
jax: 0.10.0
libtpu: 0.0.40
codegen_flags: <defaults>
</compile_context>

<pallas_src>
import functools

import jax
import jax.numpy as jnp
from jax.experimental import pallas as pl
from jax.experimental.pallas import tpu as pltpu


# ---------------------------------------------------------------------------
# Kernels
# ---------------------------------------------------------------------------

def _layernorm_kernel(*refs, eps, use_mean, x_dtype, elementwise_scale, elementwise_shift):
    """General path: one logical row per tile row, H on the lane axis."""
    x_ref = refs[0]
    idx = 1
    w_ref = b_ref = None
    if elementwise_scale:
        w_ref = refs[idx]; idx += 1
    if elementwise_shift:
        b_ref = refs[idx]; idx += 1
    o_ref = refs[idx]

    xf = x_ref[...].astype(jnp.float32)           # accumulate in f32 on all generations
    H = xf.shape[-1]
    inv_h = jnp.float32(1.0 / H)

    if use_mean:
        # Fused single-pass statistics: E[(x-mean)^2] == E[x^2] - mean^2 (clamped >= 0).
        mean = jnp.sum(xf, axis=-1, keepdims=True) * inv_h
        msq = jnp.sum(xf * xf, axis=-1, keepdims=True) * inv_h
        var = jnp.maximum(msq - mean * mean, 0.0)
        y = (xf - mean) * jax.lax.rsqrt(var + eps)
    else:
        msq = jnp.sum(xf * xf, axis=-1, keepdims=True) * inv_h
        y = xf * jax.lax.rsqrt(msq + eps)

    # Reference casts the normalized value back to the input dtype before scale/shift;
    # replicate that rounding, then do the scale/shift in f32 (single downcast at store).
    y = y.astype(x_dtype).astype(jnp.float32)
    if elementwise_scale:
        y = w_ref[...] * y                         # (1, H) f32 broadcasts over rows
    if elementwise_shift:
        y = y + b_ref[...]
    o_ref[...] = y.astype(o_ref.dtype)


def _layernorm_packed_kernel(*refs, hidden, eps, use_mean, x_dtype,
                             elementwise_scale, elementwise_shift):
    """Lane-dense path for small H: 128//H logical rows packed per 128-lane slab.

    Per-logical-row (segmented) sums are produced with a single small MXU matmul
    against a (128, 128) same-segment indicator matrix, already broadcast back
    across each segment, so everything else stays elementwise and lane-dense.
    """
    x_ref, seg_ref = refs[0], refs[1]
    idx = 2
    w_ref = b_ref = None
    if elementwise_scale:
        w_ref = refs[idx]; idx += 1
    if elementwise_shift:
        b_ref = refs[idx]; idx += 1
    o_ref = refs[idx]

    xf = x_ref[...].astype(jnp.float32)            # (br, 128)
    seg = seg_ref[...]                             # (128, 128) f32, 1 iff same segment
    inv_h = jnp.float32(1.0 / hidden)

    s = jnp.dot(xf, seg, preferred_element_type=jnp.float32) * inv_h         # E[x]  per segment
    msq = jnp.dot(xf * xf, seg, preferred_element_type=jnp.float32) * inv_h  # E[x^2] per segment

    if use_mean:
        var = jnp.maximum(msq - s * s, 0.0)
        y = (xf - s) * jax.lax.rsqrt(var + eps)
    else:
        y = xf * jax.lax.rsqrt(msq + eps)

    y = y.astype(x_dtype).astype(jnp.float32)
    if elementwise_scale:
        y = w_ref[...] * y                         # (1, 128) tiled weight
    if elementwise_shift:
        y = y + b_ref[...]
    o_ref[...] = y.astype(o_ref.dtype)


# ---------------------------------------------------------------------------
# Tiling / budgeting helpers
# ---------------------------------------------------------------------------

def _round_up(a, m):
    return -(-a // m) * m


def _default_vmem_budget():
    """(tile_budget_bytes, vmem_limit_bytes) safe on v5e/v6e/v7x."""
    vmem_limit = 32 * 1024 * 1024            # safe on v7x's 64 MiB per-TC VMEM
    try:
        cap = int(pltpu.get_tpu_info().vmem_capacity_bytes)
        vmem_limit = min(vmem_limit, max(cap // 2, 8 * 1024 * 1024))
    except Exception:
        pass
    return vmem_limit // 2, vmem_limit


def _pick_block_rows(rows, hidden, in_itemsize, out_itemsize, tile_budget_bytes):
    """Largest legal row tile whose full VMEM footprint fits the tile budget."""
    # Sub-32-bit dtypes pack along sublanes: full-vreg row multiples.
    sublane_mult = {4: 8, 2: 16, 1: 32}.get(min(in_itemsize, out_itemsize), 8)

    # Per-row VMEM footprint: double-buffered input + output slabs in their own dtypes,
    # plus ~3 f32 in-kernel temporaries (xf, squares/normalized, scaled) per row.
    per_row_bytes = 2 * hidden * in_itemsize + 2 * hidden * out_itemsize + 12 * hidden
    br = max(sublane_mult,
             (tile_budget_bytes // per_row_bytes) // sublane_mult * sublane_mult)

    # Mem-bound kernel: ~1024 rows already saturates HBM BW; bigger tiles only lengthen
    # pipeline ramp/drain and raise VMEM pressure.
    br = min(br, 1024)

    # Keep >= 4 (else >= 2) grid steps when there are enough rows so the "parallel"
    # axis can shard across both v7x TensorCores and pipeline properly.
    rows_rounded = _round_up(rows, sublane_mult)
    for steps in (4, 2):
        if rows_rounded >= steps * sublane_mult:
            br = min(br, _round_up(pl.cdiv(rows, steps), sublane_mult))
            break

    if br >= rows:
        br = rows            # single full-extent block (always a legal block shape)
    return br


# ---------------------------------------------------------------------------
# Wrapper
# ---------------------------------------------------------------------------

def layernorm_parameterized(x, weight=None, bias=None, *, eps=1e-6,
                            use_mean=False, use_high_precision_pow=False,
                            block_rows=None, tile_budget_bytes=None,
                            vmem_limit_bytes=None):
    """Pallas implementation of LayerNormParameterized.forward.

    x:      (..., H)
    weight: (H,) or None  (elementwise_scale)
    bias:   (H,) or None  (elementwise_shift)
    """
    del use_high_precision_pow   # reductions always accumulated in f32 (>= reference precision)

    orig_shape = x.shape
    H = int(orig_shape[-1])
    x2 = x.reshape(-1, H)
    R = int(x2.shape[0])

    elementwise_scale = weight is not None
    elementwise_shift = bias is not None

    # PyTorch promotion: normalized value is cast back to x.dtype, then scale/shift
    # promote against the parameter dtypes (e.g. bf16 x * f32 weight -> f32 output).
    param_dtypes = []
    if elementwise_scale:
        param_dtypes.append(weight.dtype)
    if elementwise_shift:
        param_dtypes.append(bias.dtype)
    out_dtype = jnp.result_type(x.dtype, *param_dtypes) if param_dtypes else x.dtype

    if tile_budget_bytes is None or vmem_limit_bytes is None:
        tb, vl = _default_vmem_budget()
        tile_budget_bytes = tile_budget_bytes if tile_budget_bytes is not None else tb
        vmem_limit_bytes = vmem_limit_bytes if vmem_limit_bytes is not None else vl

    in_item = jnp.dtype(x.dtype).itemsize
    out_item = jnp.dtype(out_dtype).itemsize
    x_dtype = jnp.dtype(x.dtype)

    compiler_params = pltpu.CompilerParams(
        dimension_semantics=("parallel",),
        vmem_limit_bytes=int(vmem_limit_bytes),
    )

    packed = (H < 128) and (128 % H == 0)

    if packed:
        # ------- lane-dense packed path: g = 128 // H logical rows per lane slab -------
        g = 128 // H
        Rp = pl.cdiv(R, g)
        pad_rows = Rp * g - R
        if pad_rows:
            x2 = jnp.concatenate([x2, jnp.zeros((pad_rows, H), x2.dtype)], axis=0)
        xp = x2.reshape(Rp, 128)

        if block_rows is None:
            br = _pick_block_rows(Rp, 128, in_item, out_item, tile_budget_bytes)
        else:
            br = min(int(block_rows), Rp)

        lane = jnp.arange(128, dtype=jnp.int32)
        seg = (lane[:, None] // H == lane[None, :] // H).astype(jnp.float32)

        args = [xp, seg]
        in_specs = [pl.BlockSpec((br, 128), lambda i: (i, 0)),
                    pl.BlockSpec((128, 128), lambda i: (0, 0))]
        if elementwise_scale:
            args.append(jnp.tile(weight.astype(jnp.float32).reshape(-1), g).reshape(1, 128))
            in_specs.append(pl.BlockSpec((1, 128), lambda i: (0, 0)))
        if elementwise_shift:
            args.append(jnp.tile(bias.astype(jnp.float32).reshape(-1), g).reshape(1, 128))
            in_specs.append(pl.BlockSpec((1, 128), lambda i: (0, 0)))

        kernel = functools.partial(
            _layernorm_packed_kernel, hidden=H, eps=float(eps), use_mean=use_mean,
            x_dtype=x_dtype, elementwise_scale=elementwise_scale,
            elementwise_shift=elementwise_shift)

        outp = pl.pallas_call(
            kernel,
            out_shape=jax.ShapeDtypeStruct((Rp, 128), out_dtype),
            grid=(pl.cdiv(Rp, br),),
            in_specs=in_specs,
            out_specs=pl.BlockSpec((br, 128), lambda i: (i, 0)),
            compiler_params=compiler_params,
        )(*args)

        out2 = outp.reshape(Rp * g, H)[:R]
        return out2.reshape(orig_shape)

    # ----------------- general path: H on the lane axis -----------------
    if block_rows is None:
        br = _pick_block_rows(R, H, in_item, out_item, tile_budget_bytes)
    else:
        br = min(int(block_rows), R)

    args = [x2]
    in_specs = [pl.BlockSpec((br, H), lambda i: (i, 0))]
    if elementwise_scale:
        args.append(weight.astype(jnp.float32).reshape(1, H))
        in_specs.append(pl.BlockSpec((1, H), lambda i: (0, 0)))
    if elementwise_shift:
        args.append(bias.astype(jnp.float32).reshape(1, H))
        in_specs.append(pl.BlockSpec((1, H), lambda i: (0, 0)))

    kernel = functools.partial(
        _layernorm_kernel, eps=float(eps), use_mean=use_mean, x_dtype=x_dtype,
        elementwise_scale=elementwise_scale, elementwise_shift=elementwise_shift)

    out = pl.pallas_call(
        kernel,
        out_shape=jax.ShapeDtypeStruct((R, H), out_dtype),
        grid=(pl.cdiv(R, br),),                     # ragged R handled by boundary masking
        in_specs=in_specs,
        out_specs=pl.BlockSpec((br, H), lambda i: (i, 0)),
        compiler_params=compiler_params,
    )(*args)
    return out.reshape(orig_shape)


# ---------------------------------------------------------------------------
# Pure-JAX reference (mirrors the PyTorch forward, including dtype promotion)
# ---------------------------------------------------------------------------

def _reference(x, weight=None, bias=None, *, eps=1e-6, use_mean=False,
               use_high_precision_pow=False):
    if use_mean:
        x = x - jnp.mean(x, axis=-1, keepdims=True)
    xf = x.astype(jnp.float32) if use_high_precision_pow else x
    xf = xf * jax.lax.rsqrt(jnp.mean(xf * xf, axis=-1, keepdims=True) + eps)
    y = xf.astype(x.dtype)
    if weight is not None:
        y = weight * y
    if bias is not None:
        y = y + bias
    return y


if __name__ == "__main__":
    key = jax.random.PRNGKey(0)
    kx, kw, kb, kx2, kw2, kb2 = jax.random.split(key, 6)

    # --- Packed (H < 128) lane-dense path: hidden=32 packs 4 rows per 128-lane slab ---
    batch, seq, hidden = 2, 8, 32
    x = jax.random.normal(kx, (batch, seq, hidden), dtype=jnp.float32)
    weight = jax.random.normal(kw, (hidden,), dtype=jnp.float32) * 0.1 + 1.0
    bias = jax.random.normal(kb, (hidden,), dtype=jnp.float32) * 0.1

    # Config 1: defaults (RMSNorm-style: scale only, no mean, no shift)
    out1 = layernorm_parameterized(x, weight, None, eps=1e-6, use_mean=False)
    ref1 = _reference(x, weight, None, eps=1e-6, use_mean=False)

    # Config 2: full LayerNorm-like (mean centering, scale + shift, high-precision pow)
    out2 = layernorm_parameterized(x, weight, bias, eps=1e-6, use_mean=True,
                                   use_high_precision_pow=True)
    ref2 = _reference(x, weight, bias, eps=1e-6, use_mean=True, use_high_precision_pow=True)

    # --- General (lane-axis) path: hidden=256, ragged row count exercises cdiv grid ---
    hidden2 = 256
    x3 = jax.random.normal(kx2, (3, 7, hidden2), dtype=jnp.float32)
    w3 = jax.random.normal(kw2, (hidden2,), dtype=jnp.float32) * 0.1 + 1.0
    b3 = jax.random.normal(kb2, (hidden2,), dtype=jnp.float32) * 0.1
    out3 = layernorm_parameterized(x3, w3, b3, eps=1e-6, use_mean=True, block_rows=8)
    ref3 = _reference(x3, w3, b3, eps=1e-6, use_mean=True)

    # --- Mixed dtypes: bf16 activations with f32 weight (output promotes to f32) ---
    x4 = x3.astype(jnp.bfloat16)
    out4 = layernorm_parameterized(x4, w3, None, eps=1e-6, use_mean=False,
                                   use_high_precision_pow=True)
    ref4 = _reference(x4, w3, None, eps=1e-6, use_mean=False, use_high_precision_pow=True)

    jax.block_until_ready((out1, out2, out3, out4))

    assert out1.dtype == ref1.dtype and out2.dtype == ref2.dtype
    assert out3.dtype == ref3.dtype and out4.dtype == ref4.dtype
    assert jnp.allclose(out1, ref1, atol=1e-5, rtol=1e-5), "mismatch (config 1, packed RMS)"
    assert jnp.allclose(out2, ref2, atol=1e-5, rtol=1e-5), "mismatch (config 2, packed LN)"
    assert jnp.allclose(out3, ref3, atol=1e-5, rtol=1e-5), "mismatch (config 3, ragged rows)"
    assert jnp.allclose(out4, ref4, atol=2e-3, rtol=2e-3), "mismatch (config 4, bf16/f32 mixed)"

    print("KERNEL_OK")
</pallas_src>

<mosaic_0001>
module attributes {stable_mosaic.version = 11 : i64} {
  func.func @_layernorm_packed_kernel(%arg0: i32, %arg1: memref<4x128xf32, #tpu.memory_space<vmem>>, %arg2: memref<128x128xf32, #tpu.memory_space<vmem>>, %arg3: memref<1x128xf32, #tpu.memory_space<vmem>>, %arg4: memref<4x128xf32, #tpu.memory_space<vmem>>) attributes {dimension_semantics = [#tpu.dimension_semantics<parallel>], iteration_bounds = array<i64: 1>, scalar_prefetch = 0 : i64, scratch_operands = 0 : i64, tpu.core_type = #tpu.core_type<tc>, window_params = [{transform_indices = @transform_0, window_bounds = array<i64: 4, 128>}, {pipeline_mode = #tpu.pipeline_mode<synchronous>, transform_indices = @transform_1, window_bounds = array<i64: 128, 128>}, {pipeline_mode = #tpu.pipeline_mode<synchronous>, transform_indices = @transform_2, window_bounds = array<i64: 1, 128>}, {transform_indices = @transform_3, window_bounds = array<i64: 4, 128>}]} {
    %c0 = arith.constant 0 : index
    %c0_0 = arith.constant 0 : index
    %0 = vector.load %arg1[%c0, %c0_0] : memref<4x128xf32, #tpu.memory_space<vmem>>, vector<4x128xf32>
    %c0_1 = arith.constant 0 : index
    %c0_2 = arith.constant 0 : index
    %1 = vector.load %arg2[%c0_1, %c0_2] : memref<128x128xf32, #tpu.memory_space<vmem>>, vector<128x128xf32>
    %2 = arith.mulf %0, %0 : vector<4x128xf32>
    %cst = arith.constant dense<0.000000e+00> : vector<4x128xf32>
    %3 = tpu.matmul %2, %1, %cst {dimension_numbers = #tpu.dot_dimension_numbers<[1], [0], [0], [1], [0, 0, 1, 1], [], []>} : vector<4x128xf32>, vector<128x128xf32>, vector<4x128xf32> -> vector<4x128xf32>
    %cst_3 = arith.constant 3.125000e-02 : f32
    %4 = vector.broadcast %cst_3 : f32 to vector<4x128xf32>
    %5 = arith.mulf %3, %4 : vector<4x128xf32>
    %cst_4 = arith.constant 9.99999997E-7 : f32
    %6 = vector.broadcast %cst_4 : f32 to vector<4x128xf32>
    %7 = arith.addf %5, %6 : vector<4x128xf32>
    %8 = math.rsqrt %7 : vector<4x128xf32>
    %9 = arith.mulf %0, %8 : vector<4x128xf32>
    %c0_5 = arith.constant 0 : index
    %c0_6 = arith.constant 0 : index
    %10 = vector.load %arg3[%c0_5, %c0_6] : memref<1x128xf32, #tpu.memory_space<vmem>>, vector<1x128xf32>
    %11 = vector.broadcast %10 : vector<1x128xf32> to vector<4x128xf32>
    %12 = arith.mulf %11, %9 : vector<4x128xf32>
    %c0_7 = arith.constant 0 : index
    %c0_8 = arith.constant 0 : index
    %13 = vector.load %arg4[%c0_7, %c0_8] : memref<4x128xf32, #tpu.memory_space<vmem>>, vector<4x128xf32>
    tpu.vector_store %arg4[%c0_7, %c0_8], %12 {strides = array<i32>} : memref<4x128xf32, #tpu.memory_space<vmem>>, vector<4x128xf32>,
    return
  }
  func.func @transform_0(%arg0: i32) -> (i32, i32) {
    %c0_i32 = arith.constant 0 : i32
    %c0_i32_0 = arith.constant 0 : i32
    return %arg0, %c0_i32 : i32, i32
  }
  func.func @transform_1(%arg0: i32) -> (i32, i32) {
    %c0_i32 = arith.constant 0 : i32
    %c0_i32_0 = arith.constant 0 : i32
    %c0_i32_1 = arith.constant 0 : i32
    return %c0_i32, %c0_i32_0 : i32, i32
  }
  func.func @transform_2(%arg0: i32) -> (i32, i32) {
    %c0_i32 = arith.constant 0 : i32
    %c0_i32_0 = arith.constant 0 : i32
    %c0_i32_1 = arith.constant 0 : i32
    return %c0_i32, %c0_i32_0 : i32, i32
  }
  func.func @transform_3(%arg0: i32) -> (i32, i32) {
    %c0_i32 = arith.constant 0 : i32
    %c0_i32_0 = arith.constant 0 : i32
    return %arg0, %c0_i32 : i32, i32
  }
}

</mosaic_0001>

<llo_original>
// kernel: tpu_custom_call.1
$region0: #{tpu_custom_call.1}
  #allocation0 [shape = 'u32[]', space=smem, size = 0x4, offset = 0x4, fixed_abs, tag = 'smem constant byte address 0x4 - core index']
  #allocation1 [shape = 'u32[144,128]{1,0:T(1,128)}', space=vmem, size = 0x12000, scoped, tag = 'internal scratch']
  %s0 = inlined_call_operand.hbm [shape: f32[4,128], index: 0, kind: input, shape index: {}]
  %s1 = inlined_call_operand.hbm [shape: f32[128,128], index: 1, kind: input, shape index: {}]
  %s2 = inlined_call_operand.vmem [shape: f32[1,128], index: 2, kind: input, shape index: {}]
  %s3 = inlined_call_operand.hbm [shape: f32[4,128], index: 3, kind: output, shape index: {}]
  %s4 = sld [smem:[#allocation0]]
  $region30: #{tpu_custom_call.1} parent=0
    _
  %s6 = ssub.s32 1, %s4
  %s7 = scalar_select 0, %s6, %s4
  $region1: #{tpu_custom_call.1} parent=0
    #allocation2 [shape = 'u8[2048]{0}', space=vmem, size = 0x800, scoped, tag = 'input window, operand 0, single buffered']
    #allocation3 [shape = 's32[1]{0}', space=sflag, size = 0x4, scoped, tag = 'scoped memory for tpu_custom_call.1']
    #allocation4 [shape = 's32[1]{0}', space=sflag, size = 0x4, scoped, tag = 'scoped memory for tpu_custom_call.1']
    #allocation5 [shape = 'u8[65536]{0}', space=vmem, size = 0x10000, scoped, tag = 'input window, operand 1, single buffered']
    #allocation6 [shape = 's32[1]{0}', space=sflag, size = 0x4, scoped, tag = 'scoped memory for tpu_custom_call.1']
    #allocation7 [shape = 'u8[2048]{0}', space=vmem, size = 0x800, scoped, tag = 'output window, operand 0, single buffered']
    %8 = vsyncpa [#allocation3], 0
    %9 = vsyncpa [#allocation6], 0
    %10 = vsyncpa [#allocation4], 0
    // Predicated region
    $region2: #{tpu_custom_call.1} parent=1 // pred_check
      _
    $region3: #{tpu_custom_call.1} parent=1 // pred_check_branch
      %12 = sbr.rel (0) target = $region5
    $region4: #{tpu_custom_call.1} parent=1 // pred_region
      %s14 = ssub.s32 64, 64
      %15 = vsyncadd [#allocation3], %s14
      %s17 = sshll.u32 [#allocation2], 4
      %s18 = int_to_ptr.vmem [resolvable:$true] %s17
      %20 = dma.hbm_to_vmem [thread:$0]  %s0, 64, %s18, [#allocation3]
    $region5: #{tpu_custom_call.1} parent=1 // pred_fallthru
      _
    // Predicated region
    $region6: #{tpu_custom_call.1} parent=1 // pred_check
      _
    $region7: #{tpu_custom_call.1} parent=1 // pred_check_branch
      %22 = sbr.rel (0) target = $region9
    $region8: #{tpu_custom_call.1} parent=1 // pred_region
      %s24 = ssub.s32 2048, 2048
      %25 = vsyncadd [#allocation6], %s24
      %s26 = sshll.u32 [#allocation5], 4
      %s27 = int_to_ptr.vmem [resolvable:$true] %s26
      %32 = dma.hbm_to_vmem [thread:$0]  %s1, 2048, %s27, [#allocation6], 128, 128, 8
    $region9: #{tpu_custom_call.1} parent=1 // pred_fallthru
      _
    // Predicated region
    $region10: #{tpu_custom_call.1} parent=1 // pred_check
      _
    $region11: #{tpu_custom_call.1} parent=1 // pred_check_branch
      %34 = sbr.rel (0) target = $region13
    $region12: #{tpu_custom_call.1} parent=1 // pred_region
      _
    $region13: #{tpu_custom_call.1} parent=1 // pred_fallthru
      _
    // Predicated region
    $region14: #{tpu_custom_call.1} parent=1 // pred_check
      _
    $region15: #{tpu_custom_call.1} parent=1 // pred_check_branch
      %36 = sbr.rel (0) target = $region17
    $region16: #{tpu_custom_call.1} parent=1 // pred_region
      %37 = dma.done [#allocation3], 64
    $region17: #{tpu_custom_call.1} parent=1 // pred_fallthru
      _
    // Predicated region
    $region18: #{tpu_custom_call.1} parent=1 // pred_check
      _
    $region19: #{tpu_custom_call.1} parent=1 // pred_check_branch
      %39 = sbr.rel (0) target = $region21
    $region20: #{tpu_custom_call.1} parent=1 // pred_region
      %40 = dma.done [#allocation6], 2048
    $region21: #{tpu_custom_call.1} parent=1 // pred_fallthru
      _
    %v41 = vld [vmem:[#allocation2] sm:$0xf]
    %v42 = vld [vmem:[#allocation5] sm:$0xff]
    %v43 = vld [vmem:[#allocation5 + $0x8] sm:$0xff]
    %v44 = vld [vmem:[#allocation5 + $0x10] sm:$0xff]
    %v45 = vld [vmem:[#allocation5 + $0x18] sm:$0xff]
    %v46 = vld [vmem:[#allocation5 + $0x20] sm:$0xff]
    %v47 = vld [vmem:[#allocation5 + $0x28] sm:$0xff]
    %v48 = vld [vmem:[#allocation5 + $0x30] sm:$0xff]
    %v49 = vld [vmem:[#allocation5 + $0x38] sm:$0xff]
    %v50 = vld [vmem:[#allocation5 + $0x40] sm:$0xff]
    %v51 = vld [vmem:[#allocation5 + $0x48] sm:$0xff]
    %v52 = vld [vmem:[#allocation5 + $0x50] sm:$0xff]
    %v53 = vld [vmem:[#allocation5 + $0x58] sm:$0xff]
    %v54 = vld [vmem:[#allocation5 + $0x60] sm:$0xff]
    %v55 = vld [vmem:[#allocation5 + $0x68] sm:$0xff]
    %v56 = vld [vmem:[#allocation5 + $0x70] sm:$0xff]
    %v57 = vld [vmem:[#allocation5 + $0x78] sm:$0xff]
    %v58 = vmul.f32 %v41, %v41
    %59 = vmatprep.subr.mxu0 0.0
    %60 = vmatpush1.msra.mxu0 %v42
    %61 = vmatprep.subr.mxu0 0.0
    %62 = vmatpush1.msra.mxu0 %v43
    %63 = vmatprep.subr.mxu0 0.0
    %64 = vmatpush1.msra.mxu0 %v44
    %65 = vmatprep.subr.mxu0 0.0
    %66 = vmatpush1.msra.mxu0 %v45
    %67 = vmatprep.subr.mxu0 0.0
    %68 = vmatpush1.msra.mxu0 %v46
    %69 = vmatprep.subr.mxu0 0.0
    %70 = vmatpush1.msra.mxu0 %v47
    %71 = vmatprep.subr.mxu0 0.0
    %72 = vmatpush1.msra.mxu0 %v48
    %73 = vmatprep.subr.mxu0 0.0
    %74 = vmatpush1.msra.mxu0 %v49
    %75 = vmatprep.subr.mxu0 0.0
    %76 = vmatpush1.msra.mxu0 %v50
    %77 = vmatprep.subr.mxu0 0.0
    %78 = vmatpush1.msra.mxu0 %v51
    %79 = vmatprep.subr.mxu0 0.0
    %80 = vmatpush1.msra.mxu0 %v52
    %81 = vmatprep.subr.mxu0 0.0
    %82 = vmatpush1.msra.mxu0 %v53
    %83 = vmatprep.subr.mxu0 0.0
    %84 = vmatpush1.msra.mxu0 %v54
    %85 = vmatprep.subr.mxu0 0.0
    %86 = vmatpush1.msra.mxu0 %v55
    %87 = vmatprep.subr.mxu0 0.0
    %88 = vmatpush1.msra.mxu0 %v56
    %89 = vmatprep.subr.mxu0 0.0
    %90 = vmatpush1.msra.mxu0 %v57
    %91 = vmatprep.subr.mxu0 0.0
    %92 = vmatpush1.msra.mxu0 0.0
    %93 = vmatprep.subr.mxu0 0.0
    %94 = vmatpush1.msra.mxu0 0.0
    %95 = vmatprep.subr.mxu0 0.0
    %96 = vmatpush1.msra.mxu0 0.0
    %97 = vmatprep.subr.mxu0 0.0
    %98 = vmatpush1.msra.mxu0 0.0
    %99 = vmatprep.subr.mxu0 0.0
    %100 = vmatpush1.msra.mxu0 0.0
    %101 = vmatprep.subr.mxu0 0.0
    %102 = vmatpush1.msra.mxu0 0.0
    %103 = vmatprep.subr.mxu0 0.0
    %104 = vmatpush1.msra.mxu0 0.0
    %105 = vmatprep.subr.mxu0 0.0
    %106 = vmatpush1.msra.mxu0 0.0
    %107 = vmatprep.subr.mxu0 0.0
    %108 = vmatpush1.msra.mxu0 0.0
    %109 = vmatprep.subr.mxu0 0.0
    %110 = vmatpush1.msra.mxu0 0.0
    %111 = vmatprep.subr.mxu0 0.0
    %112 = vmatpush1.msra.mxu0 0.0
    %113 = vmatprep.subr.mxu0 0.0
    %114 = vmatpush1.msra.mxu0 0.0
    %115 = vmatprep.subr.mxu0 0.0
    %116 = vmatpush1.msra.mxu0 0.0
    %117 = vmatprep.subr.mxu0 0.0
    %118 = vmatpush1.msra.mxu0 0.0
    %119 = vmatprep.subr.mxu0 0.0
    %120 = vmatpush1.msra.mxu0 0.0
    %121 = vmatprep.subr.mxu0 0.0
    %122 = vmatpush1.msra.mxu0 0.0
    %123 = vmatprep.mubr.f32.mxu0 0.0
    %124 = vmatmul.mubr.f32.gmra.mrb[0].mxu0 %v58
    %v125 = vpop.f32.mrb[0].mxu0
    %v126 = vadd.f32 0.0, %v125
    %v127 = vpop.f32.mrb[0].mxu0
    %128 = vdwg.mxu0
    %v129 = vmul.f32 %v126, 0.03125
    %v130 = vadd.f32 %v129, 1e-06
    %v131 = vrsqrt.pop %v130
    %v132 = vmul.f32 %v41, %v131
    %v133 = vld [vmem:[%s2] sm:$0x1]
    %v135 = vlaneseq
    %v136 = vshrl.u32 %v135, 7
    %v137 = vsub.s32 0, %v136
    %v138 = vrot.slane %v133, %v137
    %v140 = vmul.f32 %v138, %v132
    %141 = vst [vmem:[#allocation7] sm:$0xf] %v140
    // Predicated region
    $region22: #{tpu_custom_call.1} parent=1 // pred_check
      _
    $region23: #{tpu_custom_call.1} parent=1 // pred_check_branch
      %143 = sbr.rel (0) target = $region25
    $region24: #{tpu_custom_call.1} parent=1 // pred_region
      %s145 = ssub.s32 64, 64
      %146 = vsyncadd [#allocation4], %s145
      %s148 = sshll.u32 [#allocation7], 4
      %s149 = int_to_ptr.vmem [resolvable:$true] %s148
      %151 = dma.vmem_to_hbm [thread:$0]  %s149, 64, %s3, [#allocation4]
    $region25: #{tpu_custom_call.1} parent=1 // pred_fallthru
      _
    // Predicated region
    $region26: #{tpu_custom_call.1} parent=1 // pred_check
      _
    $region27: #{tpu_custom_call.1} parent=1 // pred_check_branch
      %153 = sbr.rel (0) target = $region29
    $region28: #{tpu_custom_call.1} parent=1 // pred_region
      %154 = dma.done [#allocation4], 64
    $region29: #{tpu_custom_call.1} parent=1 // pred_fallthru
      _
    %155 = vsyncpa [#allocation3], 1
    %156 = vsyncpa [#allocation6], 1
    %157 = vsyncpa [#allocation4], 1

</llo_original>
